<compile_context>
chip_gen: v5e
topology: v5e:2x2
jax: 0.10.0
libtpu: 0.0.40
codegen_flags: <defaults>
</compile_context>

<pallas_src>
import itertools

import jax
import jax.numpy as jnp
import numpy as np
from jax import lax
from jax.experimental import pallas as pl
from jax.experimental.pallas import tpu as pltpu

EPS = 1e-6          # reference eps: cost = -(s.n) / (|s||n| + EPS)
_NORM_EPS = 1e-12   # tiny guard inside rsqrt for the factored form
_PALLAS_MIN_FLOPS = 1 << 20  # below ~1 MFLOP the pallas_call overhead dominates


def _round_up(x: int, m: int) -> int:
    return ((x + m - 1) // m) * m


# --------------------------------------------------------------------------
# Pallas kernel: transposed (lane-dense) cosine cost block
# --------------------------------------------------------------------------
def _cost_t_kernel(s_ref, n_ref, inv_s_ref, neg_inv_n_ref, o_ref):
    # s_ref:         (TM, D) bf16   salient-object rows for this grid step
    # n_ref:         (T,  D) bf16   all noun vectors (broadcast across grid)
    # inv_s_ref:     (1,  TM) f32   1/|s| per salient row (lane-aligned)
    # neg_inv_n_ref: (T,  1)  f32   -1/|n| per noun (minus sign folded in)
    # o_ref:         (T,  TM) f32   transposed cost block (lane-dense stores)
    dots = lax.dot_general(
        n_ref[...], s_ref[...],
        dimension_numbers=(((1,), (1,)), ((), ())),   # contract D of both
        preferred_element_type=jnp.float32,
    )                                                 # (T, TM) f32 on the MXU
    # Two broadcast VPU multiplies; all transcendental work was hoisted.
    o_ref[...] = (dots * inv_s_ref[...]) * neg_inv_n_ref[...]


def _choose_tile_m(M: int, D: int, T: int, block_m: int) -> int:
    """Pick the M tile. Full block for small M; otherwise a multiple of 128
    (lane dim of the transposed output block), preferring an even grid so
    v7x megacore sharding stays balanced, capped so the double-buffered
    working set fits comfortably in scoped VMEM."""
    if M <= block_m:
        return M
    nblk = pl.cdiv(M, block_m)
    nblk += nblk % 2                                   # even grid (v7x)
    tm0 = min(_round_up(pl.cdiv(M, nblk), 128), _round_up(block_m, 128))

    def fits(tm):
        # 2x (double buffer) * (S bf16 + N bf16 + out f32 + scale rows)
        per_step = tm * D * 2 + T * D * 2 + tm * T * 4 + tm * 4 + T * 4
        return 2 * per_step < 24 * 1024 * 1024

    while tm0 > 128 and not fits(tm0):
        tm0 -= 128

    # Best-effort: largest tile <= tm0 whose grid has even parity.
    tm = tm0
    while tm >= 128:
        if pl.cdiv(M, tm) % 2 == 0:
            return tm
        tm -= 128
    return tm0


def _cost_t_xla(s: jnp.ndarray, n: jnp.ndarray) -> jnp.ndarray:
    """Tiny-problem fast path: fused XLA, no pallas_call fixed cost."""
    inv_s = lax.rsqrt(jnp.sum(s * s, axis=-1) + _NORM_EPS)          # (M,)
    inv_n = lax.rsqrt(jnp.sum(n * n, axis=-1) + _NORM_EPS)          # (T,)
    dots = lax.dot_general(n, s, (((1,), (1,)), ((), ())),
                           preferred_element_type=jnp.float32)      # (T, M)
    return -dots * inv_n[:, None] * inv_s[None, :]


def cosine_cost_matrix_t(salient_flat: jnp.ndarray,
                         nouns: jnp.ndarray,
                         *,
                         block_m: int = 1024,
                         use_pallas: bool | None = None) -> jnp.ndarray:
    """salient_flat: (M, D), nouns: (T, D) -> TRANSPOSED cost (T, M) f32.

    cost[t, m] = -(s_m . n_t) / (|s_m| |n_t|)   (factored-eps form; differs
    from the reference |s||n|+eps denominator by a relative ~eps/(|s||n|)).
    """
    M, D = salient_flat.shape
    T, Dn = nouns.shape
    assert D == Dn, "word_dim mismatch"

    s = salient_flat.astype(jnp.float32)
    n = nouns.astype(jnp.float32)

    flops = 2 * M * T * D
    if use_pallas is None:
        use_pallas = flops >= _PALLAS_MIN_FLOPS
    if not use_pallas:
        return _cost_t_xla(s, n)

    # Hoisted norms (f32 for accuracy), oriented for the transposed output:
    #   1/|s| as a lane-dense (1, M) row, -1/|n| as a (T, 1) column.
    inv_s_row = lax.rsqrt(jnp.sum(s * s, axis=-1) + _NORM_EPS)[None, :]   # (1, M)
    neg_inv_n_col = -lax.rsqrt(jnp.sum(n * n, axis=-1) + _NORM_EPS)[:, None]  # (T, 1)

    # bf16 MXU inputs, f32 accumulation in the kernel.
    s16 = s.astype(jnp.bfloat16)
    n16 = n.astype(jnp.bfloat16)

    tm = _choose_tile_m(M, D, T, block_m)
    grid_m = pl.cdiv(M, tm)

    bytes_accessed = (M * D + T * D) * 2 + M * T * 4 + (M + T) * 4
    cost_est = pl.CostEstimate(flops=flops, transcendentals=0,
                               bytes_accessed=bytes_accessed)

    return pl.pallas_call(
        _cost_t_kernel,
        out_shape=jax.ShapeDtypeStruct((T, M), jnp.float32),
        grid=(grid_m,),
        in_specs=[
            pl.BlockSpec((tm, D), lambda i: (i, 0)),    # S (bf16): tiled over M
            pl.BlockSpec((T, D), lambda i: (0, 0)),     # N (bf16): broadcast
            pl.BlockSpec((1, tm), lambda i: (0, i)),    # 1/|s| row: tiled over M
            pl.BlockSpec((T, 1), lambda i: (0, 0)),     # -1/|n| col: broadcast
        ],
        out_specs=pl.BlockSpec((T, tm), lambda i: (0, i)),   # lane-dense output
        compiler_params=pltpu.CompilerParams(
            # M tiles are independent -> shard across TCs (2 on v7x).
            dimension_semantics=("parallel",),
        ),
        cost_estimate=cost_est,
    )(s16, n16, inv_s_row, neg_inv_n_col)


# --------------------------------------------------------------------------
# Host-side Hungarian assignment
# --------------------------------------------------------------------------
def _linear_sum_assignment(cost: np.ndarray):
    """Exact brute-force assignment for small matrices (same result
    convention as scipy.optimize.linear_sum_assignment).
    # TODO(synk): O(P(C, R)) brute force; use scipy's Hungarian for large T.
    """
    cost = np.asarray(cost, dtype=np.float64)
    R, C = cost.shape
    if R <= C:
        best_sum, best_cols = None, None
        rows = np.arange(R)
        for perm in itertools.permutations(range(C), R):
            s = cost[rows, list(perm)].sum()
            if best_sum is None or s < best_sum:
                best_sum, best_cols = s, perm
        return rows.astype(np.int64), np.array(best_cols, dtype=np.int64)
    else:
        cols, rows = _linear_sum_assignment(cost.T)
        order = np.argsort(rows)
        return rows[order].astype(np.int64), cols[order].astype(np.int64)


class HungarianMatcher:
    """JAX / Pallas port of models/hungary.py::HungarianMatcher."""

    def __init__(self):
        self.eps = EPS

    def __call__(self, salient_objects: jnp.ndarray, nouns_dict_list):
        bsz, max_objects, word_dim = salient_objects.shape
        sizes = [len(item["nouns"]) for item in nouns_dict_list]
        nouns_semantics = jnp.concatenate(
            [item["vec"][: len(item["nouns"])] for item in nouns_dict_list], axis=0
        )  # (sum(sizes), word_dim)

        salient_flat = salient_objects.reshape(bsz * max_objects, word_dim)

        # Hot path on TPU: transposed (T, M) cosine cost, lane-dense stores.
        cos_t = cosine_cost_matrix_t(salient_flat, nouns_semantics)  # (T, M)

        # TODO(synk): linear_sum_assignment (Hungarian algorithm) is a sequential,
        # data-dependent algorithm with no clean Pallas equivalent; it runs on host
        # (as .cpu().numpy() in the original PyTorch module).
        cos_np_t = np.asarray(jax.device_get(cos_t))  # (T_total, bsz*max_objects)

        indices = []
        col_start = 0
        for b, size in enumerate(sizes):
            # Un-transpose on the host: numpy .T is a free view.
            sub = cos_np_t[col_start:col_start + size,
                           b * max_objects:(b + 1) * max_objects].T
            indices.append(_linear_sum_assignment(sub))
            col_start += size
        return [(np.asarray(i, dtype=np.int64), np.asarray(j, dtype=np.int64))
                for i, j in indices]


# --------------------------------------------------------------------------
# Reference + self-test
# --------------------------------------------------------------------------
def _ref_cost(s, n):
    """Exact reference (reference eps semantics), shape (M, T)."""
    s = np.asarray(s, np.float64)
    n = np.asarray(n, np.float64)
    return -(s @ n.T) / (
        np.linalg.norm(s, axis=-1, keepdims=True)
        * np.linalg.norm(n, axis=-1, keepdims=True).T
        + EPS
    )


if __name__ == "__main__":
    key = jax.random.PRNGKey(0)
    bsz, max_objects, word_dim = 2, 8, 32
    k1, k2, k3, k4, k5 = jax.random.split(key, 5)

    salient_objects = jax.random.normal(k1, (bsz, max_objects, word_dim), jnp.float32)

    # Each batch element has a padded 'vec' buffer; only the first len(nouns)
    # rows are used (as in the PyTorch forward).
    nouns_dict_list = [
        {"vec": jax.random.normal(k2, (6, word_dim), jnp.float32),
         "nouns": ["dog", "ball", "park"]},
        {"vec": jax.random.normal(k3, (6, word_dim), jnp.float32),
         "nouns": ["man", "car", "road", "tree"]},
    ]
    sizes = [len(d["nouns"]) for d in nouns_dict_list]
    nouns_cat = jnp.concatenate(
        [d["vec"][: len(d["nouns"])] for d in nouns_dict_list], axis=0)

    # --- small case: force the Pallas kernel (single full-array block) ------
    s_flat = salient_objects.reshape(-1, word_dim)
    cost_t = cosine_cost_matrix_t(s_flat, nouns_cat, use_pallas=True)  # (T, M)
    jax.block_until_ready(cost_t)
    assert np.allclose(np.asarray(cost_t).T, _ref_cost(s_flat, nouns_cat),
                       atol=2e-2, rtol=2e-2), "small-case kernel mismatch"

    # --- small case via the XLA fast path (what the matcher uses here) ------
    cost_t_fast = cosine_cost_matrix_t(s_flat, nouns_cat, use_pallas=False)
    jax.block_until_ready(cost_t_fast)
    assert np.allclose(np.asarray(cost_t_fast).T, _ref_cost(s_flat, nouns_cat),
                       atol=1e-3, rtol=1e-3), "fast-path mismatch"

    # --- larger case: exercises the M-tiled "parallel" grid (even parity,
    #     lane-dense partial last block) -------------------------------------
    s_big = jax.random.normal(k4, (1040, 64), jnp.float32)   # 1040 -> tm=640, grid=2
    n_big = jax.random.normal(k5, (33, 64), jnp.float32)
    cost_big_t = cosine_cost_matrix_t(s_big, n_big, use_pallas=True)   # (33, 1040)
    jax.block_until_ready(cost_big_t)
    assert np.allclose(np.asarray(cost_big_t).T, _ref_cost(s_big, n_big),
                       atol=2e-2, rtol=2e-2), "tiled-case kernel mismatch"

    # --- full matcher forward (cost kernel / fast path + host Hungarian) ----
    matcher = HungarianMatcher()
    out = matcher(salient_objects, nouns_dict_list)
    assert len(out) == bsz
    for (i, j), sz in zip(out, sizes):
        assert len(i) == len(j) == min(max_objects, sz)

    print("KERNEL_OK")
</pallas_src>

<mosaic_0001>
module attributes {stable_mosaic.version = 11 : i64} {
  func.func @_cost_t_kernel(%arg0: i32, %arg1: memref<16x32xbf16, #tpu.memory_space<vmem>>, %arg2: memref<7x32xbf16, #tpu.memory_space<vmem>>, %arg3: memref<1x16xf32, #tpu.memory_space<vmem>>, %arg4: memref<7x1xf32, #tpu.memory_space<vmem>>, %arg5: memref<7x16xf32, #tpu.memory_space<vmem>>) attributes {dimension_semantics = [#tpu.dimension_semantics<parallel>], iteration_bounds = array<i64: 1>, scalar_prefetch = 0 : i64, scratch_operands = 0 : i64, tpu.core_type = #tpu.core_type<tc>, window_params = [{transform_indices = @transform_0, window_bounds = array<i64: 16, 32>}, {pipeline_mode = #tpu.pipeline_mode<synchronous>, transform_indices = @transform_1, window_bounds = array<i64: 7, 32>}, {transform_indices = @transform_2, window_bounds = array<i64: 1, 16>}, {pipeline_mode = #tpu.pipeline_mode<synchronous>, transform_indices = @transform_3, window_bounds = array<i64: 7, 1>}, {transform_indices = @transform_4, window_bounds = array<i64: 7, 16>}]} {
    %c0 = arith.constant 0 : index
    %c0_0 = arith.constant 0 : index
    %0 = vector.load %arg2[%c0, %c0_0] : memref<7x32xbf16, #tpu.memory_space<vmem>>, vector<7x32xbf16>
    %c0_1 = arith.constant 0 : index
    %c0_2 = arith.constant 0 : index
    %1 = vector.load %arg1[%c0_1, %c0_2] : memref<16x32xbf16, #tpu.memory_space<vmem>>, vector<16x32xbf16>
    %cst = arith.constant dense<0.000000e+00> : vector<7x16xf32>
    %2 = tpu.matmul %0, %1, %cst {dimension_numbers = #tpu.dot_dimension_numbers<[1], [1], [0], [0], [0, 0, 1, 0], [], []>} : vector<7x32xbf16>, vector<16x32xbf16>, vector<7x16xf32> -> vector<7x16xf32>
    %c0_3 = arith.constant 0 : index
    %c0_4 = arith.constant 0 : index
    %3 = vector.load %arg3[%c0_3, %c0_4] : memref<1x16xf32, #tpu.memory_space<vmem>>, vector<1x16xf32>
    %4 = vector.broadcast %3 : vector<1x16xf32> to vector<7x16xf32>
    %5 = arith.mulf %2, %4 : vector<7x16xf32>
    %c0_5 = arith.constant 0 : index
    %c0_6 = arith.constant 0 : index
    %6 = vector.load %arg4[%c0_5, %c0_6] : memref<7x1xf32, #tpu.memory_space<vmem>>, vector<7x1xf32>
    %7 = vector.broadcast %6 : vector<7x1xf32> to vector<7x16xf32>
    %8 = arith.mulf %5, %7 : vector<7x16xf32>
    %c0_7 = arith.constant 0 : index
    %c0_8 = arith.constant 0 : index
    %9 = vector.load %arg5[%c0_7, %c0_8] : memref<7x16xf32, #tpu.memory_space<vmem>>, vector<7x16xf32>
    tpu.vector_store %arg5[%c0_7, %c0_8], %8 {strides = array<i32>} : memref<7x16xf32, #tpu.memory_space<vmem>>, vector<7x16xf32>,
    return
  }
  func.func @transform_0(%arg0: i32) -> (i32, i32) {
    %c0_i32 = arith.constant 0 : i32
    %c0_i32_0 = arith.constant 0 : i32
    return %arg0, %c0_i32 : i32, i32
  }
  func.func @transform_1(%arg0: i32) -> (i32, i32) {
    %c0_i32 = arith.constant 0 : i32
    %c0_i32_0 = arith.constant 0 : i32
    %c0_i32_1 = arith.constant 0 : i32
    return %c0_i32, %c0_i32_0 : i32, i32
  }
  func.func @transform_2(%arg0: i32) -> (i32, i32) {
    %c0_i32 = arith.constant 0 : i32
    %c0_i32_0 = arith.constant 0 : i32
    return %c0_i32, %arg0 : i32, i32
  }
  func.func @transform_3(%arg0: i32) -> (i32, i32) {
    %c0_i32 = arith.constant 0 : i32
    %c0_i32_0 = arith.constant 0 : i32
    %c0_i32_1 = arith.constant 0 : i32
    return %c0_i32, %c0_i32_0 : i32, i32
  }
  func.func @transform_4(%arg0: i32) -> (i32, i32) {
    %c0_i32 = arith.constant 0 : i32
    %c0_i32_0 = arith.constant 0 : i32
    return %c0_i32, %arg0 : i32, i32
  }
}

</mosaic_0001>

<llo_original>
// kernel: tpu_custom_call.1
$region0: #{tpu_custom_call.1}
  #allocation0 [shape = 'u32[]', space=smem, size = 0x4, offset = 0x4, fixed_abs, tag = 'smem constant byte address 0x4 - core index']
  #allocation1 [shape = 'u32[72,128]{1,0:T(1,128)}', space=vmem, size = 0x9000, scoped, tag = 'internal scratch']
  %s0 = inlined_call_operand.vmem [shape: bf16[16,32], index: 0, kind: input, shape index: {}]
  %s1 = inlined_call_operand.hbm [shape: bf16[7,32], index: 1, kind: input, shape index: {}]
  %s2 = inlined_call_operand.vmem [shape: f32[1,16], index: 2, kind: input, shape index: {}]
  %s3 = inlined_call_operand.vmem [shape: f32[7,1], index: 3, kind: input, shape index: {}]
  %s4 = inlined_call_operand.hbm [shape: f32[7,16], index: 4, kind: output, shape index: {}]
  %s5 = sld [smem:[#allocation0]]
  $region30: #{tpu_custom_call.1} parent=0
    _
  %s7 = ssub.s32 1, %s5
  %s8 = scalar_select 0, %s7, %s5
  $region1: #{tpu_custom_call.1} parent=0
    #allocation2 [shape = 'u8[2048]{0}', space=vmem, size = 0x800, scoped, tag = 'input window, operand 1, single buffered']
    #allocation3 [shape = 's32[1]{0}', space=sflag, size = 0x4, scoped, tag = 'scoped memory for tpu_custom_call.1']
    #allocation4 [shape = 's32[1]{0}', space=sflag, size = 0x4, scoped, tag = 'scoped memory for tpu_custom_call.1']
    #allocation5 [shape = 'u8[4096]{0}', space=vmem, size = 0x1000, scoped, tag = 'output window, operand 0, single buffered']
    %9 = vsyncpa [#allocation3], 0
    %10 = vsyncpa [#allocation4], 0
    // Predicated region
    $region2: #{tpu_custom_call.1} parent=1 // pred_check
      _
    $region3: #{tpu_custom_call.1} parent=1 // pred_check_branch
      %12 = sbr.rel (0) target = $region5
    $region4: #{tpu_custom_call.1} parent=1 // pred_region
      _
    $region5: #{tpu_custom_call.1} parent=1 // pred_fallthru
      _
    // Predicated region
    $region6: #{tpu_custom_call.1} parent=1 // pred_check
      _
    $region7: #{tpu_custom_call.1} parent=1 // pred_check_branch
      %14 = sbr.rel (0) target = $region9
    $region8: #{tpu_custom_call.1} parent=1 // pred_region
      %16 = vsyncadd [#allocation3], 0
      %s18 = sshll.u32 %s1, 4
      %s19 = int_to_ptr.hbm [resolvable:$true] %s18
      %s20 = sshll.u32 [#allocation2], 4
      %s21 = int_to_ptr.vmem [resolvable:$true] %s20
      %23 = dma.hbm_to_vmem [thread:$0]  %s19, 64, %s21, [#allocation3]
    $region9: #{tpu_custom_call.1} parent=1 // pred_fallthru
      _
    // Predicated region
    $region10: #{tpu_custom_call.1} parent=1 // pred_check
      _
    $region11: #{tpu_custom_call.1} parent=1 // pred_check_branch
      %25 = sbr.rel (0) target = $region13
    $region12: #{tpu_custom_call.1} parent=1 // pred_region
      _
    $region13: #{tpu_custom_call.1} parent=1 // pred_fallthru
      _
    // Predicated region
    $region14: #{tpu_custom_call.1} parent=1 // pred_check
      _
    $region15: #{tpu_custom_call.1} parent=1 // pred_check_branch
      %27 = sbr.rel (0) target = $region17
    $region16: #{tpu_custom_call.1} parent=1 // pred_region
      _
    $region17: #{tpu_custom_call.1} parent=1 // pred_fallthru
      _
    // Predicated region
    $region18: #{tpu_custom_call.1} parent=1 // pred_check
      _
    $region19: #{tpu_custom_call.1} parent=1 // pred_check_branch
      %29 = sbr.rel (0) target = $region21
    $region20: #{tpu_custom_call.1} parent=1 // pred_region
      %31 = dma.done [#allocation3], 64
    $region21: #{tpu_custom_call.1} parent=1 // pred_fallthru
      _
    %v33 = vld [vmem:[#allocation2] sm:$0xf]
    %v34 = vld [vmem:[%s0] sm:$0xf]
    %v35 = vld [vmem:[%s0 + $0x4] sm:$0xf]
    %v38 = vunpack.c.l.b16 %v34
    %v39 = vunpack.c.l.b16 %v35
    %v40 = vpack.c.b16 %v39, %v38
    %vm41 = vcmask 261120
    %v43 = vsel %vm41, %v33, 0
    %v46 = vsel %vm41, %v40, 0
    %48 = vmatpush.bf16.xpose.msra.mxu0 0
    %49 = vmatpush.bf16.xpose.msra.mxu0 0
    %50 = vmatpush.bf16.xpose.msra.mxu0 0
    %51 = vmatpush.bf16.xpose.msra.mxu0 0
    %52 = vmatpush.bf16.xpose.msra.mxu0 0
    %53 = vmatpush.bf16.xpose.msra.mxu0 0
    %54 = vmatpush.bf16.xpose.msra.mxu0 0
    %55 = vmatpush.bf16.xpose.msra.mxu0 %v46
    %56 = vmatmul.bf16.gmra.mxu0 %v43
    %v57 = vpop.f32.mrf.mxu0
    %v58 = vadd.f32 0.0, %v57
    %v59 = vpop.f32.mrf.mxu0
    %60 = vdwg.mxu0
    %v61 = vld [vmem:[%s2] sm:$0x1]
    %v63 = vperm.slane %v61, 0
    %v65 = vmul.f32 %v58, %v63
    %v66 = vld [vmem:[%s3] sm:$0x7f]
    %68 = vset.pattern.permute.xlu0 0
    %69 = vperm.xlu0 %68, %v66
    %v70 = vpop.permute.xlu0 %69
    %v72 = vmul.f32 %v65, %v70
    %vm73 = vcmask 129024
    %74 = vst.msk [vmem:[#allocation5] sm:$0x7f] %vm73, %v72
    // Predicated region
    $region22: #{tpu_custom_call.1} parent=1 // pred_check
      _
    $region23: #{tpu_custom_call.1} parent=1 // pred_check_branch
      %76 = sbr.rel (0) target = $region25
    $region24: #{tpu_custom_call.1} parent=1 // pred_region
      %78 = vsyncadd [#allocation4], 0
      %s80 = sshll.u32 [#allocation5], 4
      %s81 = int_to_ptr.vmem [resolvable:$true] %s80
      %s82 = sshll.u32 %s4, 4
      %s83 = int_to_ptr.hbm [resolvable:$true] %s82
      %85 = dma.vmem_to_hbm [thread:$0]  %s81, 128, %s83, [#allocation4]
    $region25: #{tpu_custom_call.1} parent=1 // pred_fallthru
      _
    // Predicated region
    $region26: #{tpu_custom_call.1} parent=1 // pred_check
      _
    $region27: #{tpu_custom_call.1} parent=1 // pred_check_branch
      %87 = sbr.rel (0) target = $region29
    $region28: #{tpu_custom_call.1} parent=1 // pred_region
      %89 = dma.done [#allocation4], 128
    $region29: #{tpu_custom_call.1} parent=1 // pred_fallthru
      _
    %90 = vsyncpa [#allocation3], 1
    %91 = vsyncpa [#allocation4], 1

</llo_original>
